<compile_context>
chip_gen: v7x
topology: tpu7x:2x2x1
jax: 0.10.0
libtpu: 0.0.40
codegen_flags: <defaults>
</compile_context>

<pallas_src>
import jax
import jax.numpy as jnp
from jax import lax
from jax.experimental import pallas as pl
from jax.experimental.pallas import tpu as pltpu

IN_CH = 5
OUT_CH = 10

# Cap on pixel-lanes per grid step.  Per lane the double-buffered x+out blocks
# cost (8 + 16 sublane-padded rows) * 4 B * 2 buffers = 192 B, so 128K lanes
# ~= 25 MiB, under the 32 MiB scoped-VMEM limit we request (safe on v7x's
# 64 MiB physical VMEM as well).
_MAX_LANES_PER_STEP = 131072


def _cdiv(a, b):
    return -(-a // b)


def _cnn_kernel(x_ref, w_ref, b_ref, o_ref):
    """y[b] = W^T @ x[b] + bias for every batch row in this block.

    x_ref: (nb, IN_CH, tm)   lane-dense pixel tile
    w_ref: (OUT_CH, IN_CH)   fused weight (resident in VMEM)
    b_ref: (OUT_CH, 1)       fused bias column (broadcast along lanes)
    o_ref: (nb, OUT_CH, tm)
    """
    w = w_ref[...]
    b = b_ref[...]
    nb = x_ref.shape[0]

    def one_row(i):
        y = jnp.dot(w, x_ref[i], preferred_element_type=jnp.float32)
        o_ref[i] = (y + b).astype(o_ref.dtype)

    if nb == 1:
        one_row(0)
    else:
        def body(i, carry):
            one_row(i)
            return carry
        lax.fori_loop(0, nb, body, 0, unroll=min(nb, 4))


def cnn_forward(x_nchw, w1, b1, w2, b2, *, tm=32768):
    """x_nchw: (N, 5, H, W); w1: (5,10), b1: (10,), w2: (10,10), b2: (10,).

    Returns (N, 10, H, W) = conv2(pool1(conv1(x))) with 1x1 convs and identity
    pools, computed as a single fused affine map.  Output dtype follows x
    (stream bf16 in/out by passing a bf16 x if the surrounding model allows it;
    accumulation is always f32).
    """
    N, C, H, W = x_nchw.shape
    assert C == IN_CH, f"expected {IN_CH} input channels, got {C}"
    HW = H * W

    # ---- fuse the two affine layers (pools are identity, no nonlinearity) ----
    w_comb = jnp.dot(w1, w2)           # (IN_CH, OUT_CH)
    b_comb = jnp.dot(b1, w2) + b2      # (OUT_CH,)
    w_t = w_comb.T                     # (OUT_CH, IN_CH)
    b_col = b_comb.reshape(OUT_CH, 1)

    # ---- pixel axis last; pure reshape of NCHW (no transpose, no copy) ----
    x3 = x_nchw.reshape(N, C, HW)

    # ---- lane tile: large, VMEM-capped; full-HW block when HW is small ----
    tm_cap = max(128, min(int(tm), _MAX_LANES_PER_STEP))
    if HW <= tm_cap:
        tm_eff = HW                      # full dim: (8,128) rule waived, no pad
    else:
        tm_eff = (tm_cap // 128) * 128   # lane-aligned; ragged edge masked
    n_lane = _cdiv(HW, tm_eff)

    # ---- batch blocking: amortize per-step overhead when HW is small, but
    # keep >= 2 grid steps (when N allows) so both v7x TCs get work ----------
    if n_lane == 1:
        nb = min(N, max(1, tm_cap // max(HW, 1)))
        if N >= 2:
            nb = min(nb, _cdiv(N, 2))
    else:
        nb = 1
    n_batch = _cdiv(N, nb)

    grid = (n_batch, n_lane)

    flops = 2 * N * HW * IN_CH * OUT_CH
    itemsize = x3.dtype.itemsize
    bytes_accessed = int(N * (IN_CH + OUT_CH) * HW * itemsize
                         + 4 * (w_t.size + b_col.size))

    out3 = pl.pallas_call(
        _cnn_kernel,
        out_shape=jax.ShapeDtypeStruct((N, OUT_CH, HW), x_nchw.dtype),
        grid_spec=pltpu.PrefetchScalarGridSpec(
            num_scalar_prefetch=0,
            grid=grid,
            in_specs=[
                # (nb, 5, tm) pixel tile
                pl.BlockSpec((nb, IN_CH, tm_eff), lambda i, j: (i, 0, j)),
                # fused weight (whole array, resident)
                pl.BlockSpec((OUT_CH, IN_CH), lambda i, j: (0, 0)),
                # fused bias column (whole array, resident)
                pl.BlockSpec((OUT_CH, 1), lambda i, j: (0, 0)),
            ],
            out_specs=pl.BlockSpec((nb, OUT_CH, tm_eff), lambda i, j: (i, 0, j)),
        ),
        compiler_params=pltpu.CompilerParams(
            dimension_semantics=("parallel", "parallel"),
            vmem_limit_bytes=32 * 1024 * 1024),
        cost_estimate=pl.CostEstimate(
            flops=flops, transcendentals=0, bytes_accessed=bytes_accessed),
    )(x3, w_t, b_col)

    # Restore NCHW (pure reshape; no padding was added, nothing to slice off).
    return out3.reshape(N, OUT_CH, H, W)


def _reference(x_nchw, w1, b1, w2, b2):
    # Plain-JAX reference of the unfused math (1x1 convs as einsums).
    h1 = jnp.einsum("nchw,co->nohw", x_nchw, w1) + b1[None, :, None, None]
    h2 = jnp.einsum("nchw,co->nohw", h1, w2) + b2[None, :, None, None]
    return h2


def _check(x, w1, b1, w2, b2, **kw):
    out = jax.block_until_ready(cnn_forward(x, w1, b1, w2, b2, **kw))
    ref = _reference(x, w1, b1, w2, b2)
    assert out.shape == ref.shape
    assert jnp.allclose(out, ref, atol=1e-4, rtol=1e-4)
    return out


if __name__ == "__main__":
    key = jax.random.PRNGKey(0)
    k_x, k_w1, k_b1, k_w2, k_b2 = jax.random.split(key, 5)

    # Deterministic synthetic parameters (already in (C_in, C_out) layout,
    # i.e. PyTorch (out, in, 1, 1) weights squeezed + transposed).
    w1 = 0.1 * jax.random.normal(k_w1, (IN_CH, OUT_CH), dtype=jnp.float32)
    b1 = 0.1 * jax.random.normal(k_b1, (OUT_CH,), dtype=jnp.float32)
    w2 = 0.1 * jax.random.normal(k_w2, (OUT_CH, OUT_CH), dtype=jnp.float32)
    b2 = 0.1 * jax.random.normal(k_b2, (OUT_CH,), dtype=jnp.float32)

    # Primary case: N=2, 16x16 -> single full-HW lane block, grid (2, 1).
    x = jax.random.normal(k_x, (2, IN_CH, 16, 16), dtype=jnp.float32)
    out = _check(x, w1, b1, w2, b2)
    assert out.shape == (2, OUT_CH, 16, 16)

    # Batch-blocked small-HW case (HW=81 not a multiple of 128; nb=2).
    x2 = jax.random.normal(k_x, (4, IN_CH, 9, 9), dtype=jnp.float32)
    _check(x2, w1, b1, w2, b2)

    # Ragged lane-edge case (HW=320, tm=256 -> masked last block, no pad/slice).
    x3 = jax.random.normal(k_x, (1, IN_CH, 16, 20), dtype=jnp.float32)
    _check(x3, w1, b1, w2, b2, tm=256)

    print("KERNEL_OK")
</pallas_src>

<mosaic_0001>
module attributes {stable_mosaic.version = 11 : i64} {
  func.func @_cnn_kernel(%arg0: i32, %arg1: i32, %arg2: memref<1x5x256xf32, #tpu.memory_space<vmem>>, %arg3: memref<10x5xf32, #tpu.memory_space<vmem>>, %arg4: memref<10x1xf32, #tpu.memory_space<vmem>>, %arg5: memref<1x10x256xf32, #tpu.memory_space<vmem>>) attributes {dimension_semantics = [#tpu.dimension_semantics<parallel>, #tpu.dimension_semantics<parallel>], iteration_bounds = array<i64: 2, 1>, scalar_prefetch = 0 : i64, scratch_operands = 0 : i64, tpu.core_type = #tpu.core_type<tc>, window_params = [{transform_indices = @transform_0, window_bounds = array<i64: 1, 5, 256>}, {pipeline_mode = #tpu.pipeline_mode<synchronous>, transform_indices = @transform_1, window_bounds = array<i64: 10, 5>}, {pipeline_mode = #tpu.pipeline_mode<synchronous>, transform_indices = @transform_2, window_bounds = array<i64: 10, 1>}, {transform_indices = @transform_3, window_bounds = array<i64: 1, 10, 256>}]} {
    %c0 = arith.constant 0 : index
    %c0_0 = arith.constant 0 : index
    %0 = vector.load %arg3[%c0, %c0_0] : memref<10x5xf32, #tpu.memory_space<vmem>>, vector<10x5xf32>
    %c0_1 = arith.constant 0 : index
    %c0_2 = arith.constant 0 : index
    %1 = vector.load %arg4[%c0_1, %c0_2] : memref<10x1xf32, #tpu.memory_space<vmem>>, vector<10x1xf32>
    %c0_3 = arith.constant 0 : index
    %c0_4 = arith.constant 0 : index
    %c0_5 = arith.constant 0 : index
    %2 = vector.load %arg2[%c0_3, %c0_4, %c0_5] : memref<1x5x256xf32, #tpu.memory_space<vmem>>, vector<1x5x256xf32>
    %3 = vector.shape_cast %2 : vector<1x5x256xf32> to vector<5x256xf32>
    %cst = arith.constant dense<0.000000e+00> : vector<10x256xf32>
    %4 = tpu.matmul %0, %3, %cst {dimension_numbers = #tpu.dot_dimension_numbers<[1], [0], [0], [1], [0, 0, 1, 1], [], []>} : vector<10x5xf32>, vector<5x256xf32>, vector<10x256xf32> -> vector<10x256xf32>
    %5 = vector.broadcast %1 : vector<10x1xf32> to vector<10x256xf32>
    %6 = arith.addf %4, %5 : vector<10x256xf32>
    %c0_6 = arith.constant 0 : index
    %c0_7 = arith.constant 0 : index
    %c0_8 = arith.constant 0 : index
    %7 = vector.load %arg5[%c0_6, %c0_7, %c0_8] : memref<1x10x256xf32, #tpu.memory_space<vmem>>, vector<1x10x256xf32>
    %8 = vector.shape_cast %7 : vector<1x10x256xf32> to vector<10x256xf32>
    %9 = vector.shape_cast %6 : vector<10x256xf32> to vector<1x10x256xf32>
    tpu.vector_store %arg5[%c0_6, %c0_7, %c0_8], %9 {strides = array<i32>} : memref<1x10x256xf32, #tpu.memory_space<vmem>>, vector<1x10x256xf32>,
    return
  }
  func.func @transform_0(%arg0: i32, %arg1: i32) -> (i32, i32, i32) {
    %c0_i32 = arith.constant 0 : i32
    %c0_i32_0 = arith.constant 0 : i32
    return %arg0, %c0_i32, %arg1 : i32, i32, i32
  }
  func.func @transform_1(%arg0: i32, %arg1: i32) -> (i32, i32) {
    %c0_i32 = arith.constant 0 : i32
    %c0_i32_0 = arith.constant 0 : i32
    %c0_i32_1 = arith.constant 0 : i32
    return %c0_i32, %c0_i32_0 : i32, i32
  }
  func.func @transform_2(%arg0: i32, %arg1: i32) -> (i32, i32) {
    %c0_i32 = arith.constant 0 : i32
    %c0_i32_0 = arith.constant 0 : i32
    %c0_i32_1 = arith.constant 0 : i32
    return %c0_i32, %c0_i32_0 : i32, i32
  }
  func.func @transform_3(%arg0: i32, %arg1: i32) -> (i32, i32, i32) {
    %c0_i32 = arith.constant 0 : i32
    %c0_i32_0 = arith.constant 0 : i32
    return %arg0, %c0_i32, %arg1 : i32, i32, i32
  }
}

</mosaic_0001>

<llo_original>
// kernel: tpu_custom_call.1
$region0: #{tpu_custom_call.1}
  #allocation0 [shape = 'u32[]', space=smem, size = 0x4, offset = 0x4, fixed_abs, tag = 'smem constant byte address 0x4 - core index']
  #allocation1 [shape = 'u32[144,128]{1,0:T(1,128)}', space=vmem, size = 0x12000, scoped, tag = 'internal scratch']
  %s0 = inlined_call_operand.vmem [shape: f32[2,5,256], index: 0, kind: input, shape index: {}]
  %s1 = inlined_call_operand.vmem [shape: f32[10,5], index: 1, kind: input, shape index: {}]
  %s2 = inlined_call_operand.vmem [shape: f32[10,1], index: 2, kind: input, shape index: {}]
  %s3 = inlined_call_operand.vmem [shape: f32[2,10,256], index: 3, kind: output, shape index: {}]
  %s4 = sld [smem:[#allocation0]]
  $region45: #{tpu_custom_call.1} parent=0
    _
  %s6 = ssub.s32 1, %s4
  %s7 = scalar_select 0, %s6, %s4
  loop: start=0, step=1, limit=4
  $region2: #{tpu_custom_call.1} parent=0 // loop_pre_header
    _
  $region3: #{tpu_custom_call.1} parent=0 // loop_header
    %s9 = sphi 0, %s13
    %p10 = scmp.ge.s32.totalorder %s9, 4
    %s16 = sphi 0, %s28
    %s17 = sphi 0, %s24
    %s18 = sphi 0, %s16
    %s19 = sphi 0, %s17
    %s20 = sphi 0, %s18
    %s21 = sphi 0, %s19
    %s33 = sphi 0, %s35
    %s36 = sphi 0, %s33
    %s37 = sphi 0, %s36
    %s53 = sphi 0, %s37
    %s57 = sphi 0, %s57
    %s59 = sphi 0, %s57
    %s60 = sphi 0, %s59
    %s74 = sphi 0, %s60
    %s78 = sphi 0, %s78
    %s80 = sphi 0, %s78
    %s81 = sphi 0, %s80
    %s95 = sphi 0, %s81
    %s103 = sphi 0, %s105
    %s106 = sphi 0, %s103
    %s107 = sphi 0, %s106
    %s123 = sphi 0, %s107
  $region4: #{tpu_custom_call.1} parent=0 // loop_header_branch
    %12 = sbr.rel (%p10) target = $region8
  $region5: #{tpu_custom_call.1} parent=0 // loop_body
    %s14 = ssub.s32 %s9, 1
    %s15 = ssub.s32 %s9, 2
    %s22 = sadd.s32 1, %s17
    %p23 = scmp.ge.s32.totalorder %s22, 1
    %s24 = scalar_select %p23, 0, %s22
    %s25 = sadd.s32 1, %s16
    %s26 = scalar_select %p23, %s25, %s16
    %p27 = scmp.ge.s32.totalorder %s26, 2
    %s28 = scalar_select %p27, 0, %s26
    %s29 = ssub.s32 %s16, %s28
    %s30 = ssub.s32 %s17, %s24
    %s31 = sor.u32 %s29, %s30
    %p32 = scmp.eq.s32.totalorder %s31, 0
    %s34 = sadd.s32 %s33, 1
    %s35 = scalar_select %p32, %s33, %s34
    %p38 = pneg %p32
    %p39 = scmp.eq.s32.totalorder %s9, 1
    %p40 = por %p38, %p39
    %p41 = scmp.ne.s32.totalorder %s33, %s36
    %p42 = scmp.eq.s32.totalorder %s9, 0
    %p43 = por %p41, %p42
    %p44 = scmp.ne.s32.totalorder %s33, %s36
    %p45 = scmp.eq.s32.totalorder %s14, 1
    %p46 = por %p44, %p45
    %p47 = scmp.ne.s32.totalorder %s36, %s37
    %p48 = scmp.eq.s32.totalorder %s14, 0
    %p49 = por %p47, %p48
    %p50 = scmp.ne.s32.totalorder %s36, %s37
    %p51 = scmp.eq.s32.totalorder %s15, 1
    %p52 = por %p50, %p51
    %p54 = scmp.ne.s32.totalorder %s37, %s53
    %p55 = scmp.eq.s32.totalorder %s15, 0
    %p56 = por %p54, %p55
    %s58 = sadd.s32 %s57, 1
    %p61 = scmp.eq.s32.totalorder %s9, 1
    %p62 = scmp.ne.s32.totalorder %s57, %s59
    %p63 = scmp.eq.s32.totalorder %s9, 0
    %p64 = por %p62, %p63
    %p65 = scmp.ne.s32.totalorder %s57, %s59
    %p66 = scmp.eq.s32.totalorder %s14, 1
    %p67 = por %p65, %p66
    %p68 = scmp.ne.s32.totalorder %s59, %s60
    %p69 = scmp.eq.s32.totalorder %s14, 0
    %p70 = por %p68, %p69
    %p71 = scmp.ne.s32.totalorder %s59, %s60
    %p72 = scmp.eq.s32.totalorder %s15, 1
    %p73 = por %p71, %p72
    %p75 = scmp.ne.s32.totalorder %s60, %s74
    %p76 = scmp.eq.s32.totalorder %s15, 0
    %p77 = por %p75, %p76
    %s79 = sadd.s32 %s78, 1
    %p82 = scmp.eq.s32.totalorder %s9, 1
    %p83 = scmp.ne.s32.totalorder %s78, %s80
    %p84 = scmp.eq.s32.totalorder %s9, 0
    %p85 = por %p83, %p84
    %p86 = scmp.ne.s32.totalorder %s78, %s80
    %p87 = scmp.eq.s32.totalorder %s14, 1
    %p88 = por %p86, %p87
    %p89 = scmp.ne.s32.totalorder %s80, %s81
    %p90 = scmp.eq.s32.totalorder %s14, 0
    %p91 = por %p89, %p90
    %p92 = scmp.ne.s32.totalorder %s80, %s81
    %p93 = scmp.eq.s32.totalorder %s15, 1
    %p94 = por %p92, %p93
    %p96 = scmp.ne.s32.totalorder %s81, %s95
    %p97 = scmp.eq.s32.totalorder %s15, 0
    %p98 = por %p96, %p97
    %s99 = ssub.s32 %s16, %s28
    %s100 = ssub.s32 %s17, %s24
    %s101 = sor.u32 %s99, %s100
    %p102 = scmp.eq.s32.totalorder %s101, 0
    %s104 = sadd.s32 %s103, 1
    %s105 = scalar_select %p102, %s103, %s104
    %p108 = pneg %p102
    %p109 = scmp.eq.s32.totalorder %s9, 1
    %p110 = por %p108, %p109
    %p111 = scmp.ne.s32.totalorder %s103, %s106
    %p112 = scmp.eq.s32.totalorder %s9, 0
    %p113 = por %p111, %p112
    %p114 = scmp.ne.s32.totalorder %s103, %s106
    %p115 = scmp.eq.s32.totalorder %s14, 1
    %p116 = por %p114, %p115
    %p117 = scmp.ne.s32.totalorder %s106, %s107
    %p118 = scmp.eq.s32.totalorder %s14, 0
    %p119 = por %p117, %p118
    %p120 = scmp.ne.s32.totalorder %s106, %s107
    %p121 = scmp.eq.s32.totalorder %s15, 1
    %p122 = por %p120, %p121
    %p124 = scmp.ne.s32.totalorder %s107, %s123
    %p125 = scmp.eq.s32.totalorder %s15, 0
    %p126 = por %p124, %p125
    %p127 = scmp.le.s32.totalorder 1, %s9
    %p128 = scmp.lt.s32.totalorder %s9, 3
    %p129 = pnand %p127, %p128
    %p130 = pneg %p129
    // Predicated region
    $region9: #{tpu_custom_call.1} parent=5 // pred_check
      _
    $region10: #{tpu_custom_call.1} parent=5 // pred_check_branch
      %132 = sbr.rel (%p129) target = $region12
    $region11: #{tpu_custom_call.1} parent=5 // pred_region
      %s133 = ssub.s32 %s9, 1
      // Predicated region
      $region13: #{tpu_custom_call.1} parent=11 // pred_check
        %p134 = pneg %p70
      $region14: #{tpu_custom_call.1} parent=11 // pred_check_branch
        %136 = sbr.rel (%p134) target = $region16
      $region15: #{tpu_custom_call.1} parent=11 // pred_region
        _
      $region16: #{tpu_custom_call.1} parent=11 // pred_fallthru
        _
      // Predicated region
      $region17: #{tpu_custom_call.1} parent=11 // pred_check
        %p137 = pneg %p91
      $region18: #{tpu_custom_call.1} parent=11 // pred_check_branch
        %139 = sbr.rel (%p137) target = $region20
      $region19: #{tpu_custom_call.1} parent=11 // pred_region
        _
      $region20: #{tpu_custom_call.1} parent=11 // pred_fallthru
        _
    $region12: #{tpu_custom_call.1} parent=5 // pred_fallthru
      _
    %p140 = scmp.lt.s32.totalorder %s9, 2
    // Predicated region
    $region21: #{tpu_custom_call.1} parent=5 // pred_check
      %p141 = pneg %p140
    $region22: #{tpu_custom_call.1} parent=5 // pred_check_branch
      %143 = sbr.rel (%p141) target = $region24
    $region23: #{tpu_custom_call.1} parent=5 // pred_region
      // Predicated region
      $region25: #{tpu_custom_call.1} parent=23 // pred_check
        %p144 = pneg %p43
      $region26: #{tpu_custom_call.1} parent=23 // pred_check_branch
        %146 = sbr.rel (%p144) target = $region28
      $region27: #{tpu_custom_call.1} parent=23 // pred_region
        %s147 = smul.u32 2, %s17
        %p148 = scmp.lt.s32.totalorder %s16, 1
        %s149 = scalar_select %p148, %s16, 1
        %p150 = scmp.lt.s32.totalorder %s147, 1
        %s151 = scalar_select %p150, %s147, 1
        %s152 = smul.addr %s149, 2
        %s153 = sadd.s32 %s151, %s152
        %s154 = smul.addr %s153, 8
        %s155 = scalar_lea.vmem %s0, %s154
        %s156 = smul.u32 2, %s17
      $region28: #{tpu_custom_call.1} parent=23 // pred_fallthru
        _
    $region24: #{tpu_custom_call.1} parent=5 // pred_fallthru
      _
    %p157 = scmp.le.s32.totalorder 1, %s9
    %p158 = scmp.lt.s32.totalorder %s9, 3
    %p159 = pnand %p157, %p158
    %p160 = pneg %p159
    // Predicated region
    $region29: #{tpu_custom_call.1} parent=5 // pred_check
      _
    $region30: #{tpu_custom_call.1} parent=5 // pred_check_branch
      %162 = sbr.rel (%p159) target = $region32
    $region31: #{tpu_custom_call.1} parent=5 // pred_region
      %s163 = ssub.s32 %s9, 1
      %s164 = smul.u32 2, %s19
      %p165 = scmp.lt.s32.totalorder %s18, 1
      %s166 = scalar_select %p165, %s18, 1
      %p167 = scmp.lt.s32.totalorder %s164, 1
      %s168 = scalar_select %p167, %s164, 1
      %s169 = smul.addr %s166, 2
      %s170 = sadd.s32 %s168, %s169
      %s171 = smul.addr %s170, 8
      %s172 = scalar_lea.vmem %s0, %s171
      %p173 = pneg %p49
      %p174 = pneg %p46
      %p175 = pneg %p70
      %p176 = pneg %p67
      %p177 = pneg %p91
      %p178 = pneg %p88
      %p179 = pneg %p119
      %p180 = pneg %p116
      %s181 = smul.u32 2, %s19
      %p182 = scmp.lt.s32.totalorder %s18, 1
      %s183 = scalar_select %p182, %s18, 1
      %p184 = scmp.lt.s32.totalorder %s181, 1
      %s185 = scalar_select %p184, %s181, 1
      %s186 = smul.addr %s183, 4
      %s187 = sadd.s32 %s185, %s186
      %s188 = smul.addr %s187, 8
      %s189 = scalar_lea.vmem %s3, %s188
      %s190 = smul.u32 2, %s19
      %p191 = scmp.lt.s32.totalorder %s18, 1
      %s192 = scalar_select %p191, %s18, 1
      %p193 = scmp.lt.s32.totalorder %s190, 1
      %s194 = scalar_select %p193, %s190, 1
      %s195 = smul.addr %s192, 2
      %s196 = sadd.s32 %s194, %s195
      %s197 = smul.addr %s196, 8
      %s198 = scalar_lea.vmem %s0, %s197
      %s199 = smul.u32 2, %s19
      %s200 = smul.u32 2, %s19
      %p201 = scmp.lt.s32.totalorder %s18, 1
      %s202 = scalar_select %p201, %s18, 1
      %p203 = scmp.lt.s32.totalorder %s200, 1
      %s204 = scalar_select %p203, %s200, 1
      %s205 = smul.addr %s202, 4
      %s206 = sadd.s32 %s204, %s205
      %s207 = smul.addr %s206, 8
      %s208 = scalar_lea.vmem %s3, %s207
      %s209 = smul.u32 2, %s19
      %v210 = vld [vmem:[%s1] sm:$0xff]
      %v211 = vld [vmem:[%s1 + $0x8] sm:$0x3]
      %v212 = vld [vmem:[%s2] sm:$0xff]
      %v213 = vld [vmem:[%s2 + $0x8] sm:$0x3]
      %v214 = vld [vmem:[%s198] sm:$0x1f]
      %v215 = vld [vmem:[%s198 + $0x8] sm:$0x1f]
      %217 = vset.pattern.permute.xlu0 0
      %218 = vperm.xlu0 %217, %v212
      %v219 = vpop.permute.xlu0 %218
      %222 = vset.pattern.permute.xlu0 0
      %223 = vperm.xlu0 %222, %v213
      %v224 = vpop.permute.xlu0 %223
      %vm226 = vcmask 39936
      %v228 = vsel %vm226, %v210, 0
      %v231 = vsel %vm226, %v211, 0
      %vm233 = vcmask 1044480
      %v235 = vsel %vm233, %v214, 0
      %v238 = vsel %vm233, %v215, 0
      %240 = vmatprep.subr.mxu0 %v238
      %241 = vmatpush1.msra.mxu0 %v235
      %242 = vmatprep.subr.mxu0 0.0
      %243 = vmatpush1.msra.mxu0 0.0
      %244 = vmatprep.subr.mxu0 0.0
      %245 = vmatpush1.msra.mxu0 0.0
      %246 = vmatprep.subr.mxu0 0.0
      %247 = vmatpush1.msra.mxu0 0.0
      %248 = vmatprep.subr.mxu0 0.0
      %249 = vmatpush1.msra.mxu0 0.0
      %250 = vmatprep.subr.mxu0 0.0
      %251 = vmatpush1.msra.mxu0 0.0
      %252 = vmatprep.subr.mxu0 0.0
      %253 = vmatpush1.msra.mxu0 0.0
      %254 = vmatprep.subr.mxu0 0.0
      %255 = vmatpush1.msra.mxu0 0.0
      %256 = vmatprep.subr.mxu0 0.0
      %257 = vmatpush1.msra.mxu0 0.0
      %258 = vmatprep.subr.mxu0 0.0
      %259 = vmatpush1.msra.mxu0 0.0
      %260 = vmatprep.subr.mxu0 0.0
      %261 = vmatpush1.msra.mxu0 0.0
      %262 = vmatprep.subr.mxu0 0.0
      %263 = vmatpush1.msra.mxu0 0.0
      %264 = vmatprep.subr.mxu0 0.0
      %265 = vmatpush1.msra.mxu0 0.0
      %266 = vmatprep.subr.mxu0 0.0
      %267 = vmatpush1.msra.mxu0 0.0
      %268 = vmatprep.subr.mxu0 0.0
      %269 = vmatpush1.msra.mxu0 0.0
      %270 = vmatprep.subr.mxu0 0.0
      %271 = vmatpush1.msra.mxu0 0.0
      %272 = vmatprep.subr.mxu0 0.0
      %273 = vmatpush1.msra.mxu0 0.0
      %274 = vmatprep.subr.mxu0 0.0
      %275 = vmatpush1.msra.mxu0 0.0
      %276 = vmatprep.subr.mxu0 0.0
      %277 = vmatpush1.msra.mxu0 0.0
      %278 = vmatprep.subr.mxu0 0.0
      %279 = vmatpush1.msra.mxu0 0.0
      %280 = vmatprep.subr.mxu0 0.0
      %281 = vmatpush1.msra.mxu0 0.0
      %282 = vmatprep.subr.mxu0 0.0
      %283 = vmatpush1.msra.mxu0 0.0
      %284 = vmatprep.subr.mxu0 0.0
      %285 = vmatpush1.msra.mxu0 0.0
      %286 = vmatprep.subr.mxu0 0.0
      %287 = vmatpush1.msra.mxu0 0.0
      %288 = vmatprep.subr.mxu0 0.0
      %289 = vmatpush1.msra.mxu0 0.0
      %290 = vmatprep.subr.mxu0 0.0
      %291 = vmatpush1.msra.mxu0 0.0
      %292 = vmatprep.subr.mxu0 0.0
      %293 = vmatpush1.msra.mxu0 0.0
      %294 = vmatprep.subr.mxu0 0.0
      %295 = vmatpush1.msra.mxu0 0.0
      %296 = vmatprep.subr.mxu0 0.0
      %297 = vmatpush1.msra.mxu0 0.0
      %298 = vmatprep.subr.mxu0 0.0
      %299 = vmatpush1.msra.mxu0 0.0
      %300 = vmatprep.subr.mxu0 0.0
      %301 = vmatpush1.msra.mxu0 0.0
      %302 = vmatprep.subr.mxu0 0.0
      %303 = vmatpush1.msra.mxu0 0.0
      %304 = vmatprep.mubr.f32.mxu0 0.0
      %305 = vmatmul.mubr.f32.gmra.mrb[0].mxu0 %v228
      %v306 = vpop.f32.mrb[0].mxu0
      %v307 = vadd.f32 %v219, %v306
      %v308 = vpop.f32.mrb[0].mxu0
      %v309 = vadd.f32 %v219, %v308
      %310 = vmatprep.mubr.f32.mxu0 0.0
      %311 = vmatmul.mubr.f32.gmra.mrb[0].mxu0 %v231
      %v312 = vpop.f32.mrb[0].mxu0
      %v313 = vadd.f32 %v224, %v312
      %v314 = vpop.f32.mrb[0].mxu0
      %v315 = vadd.f32 %v224, %v314
      %316 = vdwg.mxu0
      %317 = vst [vmem:[%s208] sm:$0xff] %v307
      %318 = vst [vmem:[%s208 + $0x8] sm:$0xff] %v309
      %319 = vst [vmem:[%s208 + $0x10] sm:$0x3] %v313
      %320 = vst [vmem:[%s208 + $0x18] sm:$0x3] %v315
      %s321 = smul.u32 2, %s19
      %p322 = scmp.lt.s32.totalorder %s18, 1
      %s323 = scalar_select %p322, %s18, 1
      %p324 = scmp.lt.s32.totalorder %s321, 1
      %s325 = scalar_select %p324, %s321, 1
      %s326 = smul.addr %s323, 4
      %s327 = sadd.s32 %s325, %s326
      %s328 = smul.addr %s327, 8
      %s329 = scalar_lea.vmem %s3, %s328
      // Predicated region
      $region33: #{tpu_custom_call.1} parent=31 // pred_check
        %p330 = pneg %p116
      $region34: #{tpu_custom_call.1} parent=31 // pred_check_branch
        %332 = sbr.rel (%p330) target = $region36
      $region35: #{tpu_custom_call.1} parent=31 // pred_region
        %s333 = smul.u32 2, %s19
      $region36: #{tpu_custom_call.1} parent=31 // pred_fallthru
        _
    $region32: #{tpu_custom_call.1} parent=5 // pred_fallthru
      _
    %p334 = scmp.le.s32.totalorder 2, %s9
    // Predicated region
    $region37: #{tpu_custom_call.1} parent=5 // pred_check
      %p335 = pneg %p334
    $region38: #{tpu_custom_call.1} parent=5 // pred_check_branch
      %337 = sbr.rel (%p335) target = $region40
    $region39: #{tpu_custom_call.1} parent=5 // pred_region
      %s338 = ssub.s32 %s9, 2
      // Predicated region
      $region41: #{tpu_custom_call.1} parent=39 // pred_check
        %p339 = pneg %p122
      $region42: #{tpu_custom_call.1} parent=39 // pred_check_branch
        %341 = sbr.rel (%p339) target = $region44
      $region43: #{tpu_custom_call.1} parent=39 // pred_region
        %s342 = smul.u32 2, %s21
        %p343 = scmp.lt.s32.totalorder %s20, 1
        %s344 = scalar_select %p343, %s20, 1
        %p345 = scmp.lt.s32.totalorder %s342, 1
        %s346 = scalar_select %p345, %s342, 1
        %s347 = smul.addr %s344, 4
        %s348 = sadd.s32 %s346, %s347
        %s349 = smul.addr %s348, 8
        %s350 = scalar_lea.vmem %s3, %s349
      $region44: #{tpu_custom_call.1} parent=39 // pred_fallthru
        _
    $region40: #{tpu_custom_call.1} parent=5 // pred_fallthru
      _
  $region6: #{tpu_custom_call.1} parent=0 // loop_footer
    %s13 = sadd.s32 1, %s9
  $region7: #{tpu_custom_call.1} parent=0 // loop_footer_branch
    %8 = sbr.rel target = $region3
  $region8: #{tpu_custom_call.1} parent=0 // loop_exit
    _

</llo_original>
